<compile_context>
chip_gen: v6e
topology: v6e:2x2x1
jax: 0.10.0
libtpu: 0.0.40
codegen_flags: <defaults>
</compile_context>

<pallas_src>
import math

import jax
import jax.numpy as jnp
from jax.experimental import pallas as pl
from jax.experimental.pallas import tpu as pltpu

_LANE = 128          # vreg lane width: every feature dim is zero-padded to this
_MIN_TILE_B = 16     # batch-tile granularity (16 rows = bf16 sublane packing)
_MAX_TILE_B = 256    # max batch-tile; sweep up to 512 on v5e/v6e (128 MiB VMEM)


def _round_up(n, m):
    return ((n + m - 1) // m) * m


def _pad_batch(batch):
    """Padded batch size and batch-tile size.  Guarantees >=2 tiles whenever
    the batch allows it so dimension_semantics=("parallel",) actually shards
    the grid across both TensorCores on v7x."""
    b = _round_up(max(int(batch), 1), _MIN_TILE_B)
    if b <= _MIN_TILE_B:
        return b, b                     # too small to split across cores
    tile = min(_MAX_TILE_B, _round_up((b + 1) // 2, _MIN_TILE_B))
    return _round_up(b, tile), tile


def _physical_vmem_bytes():
    try:
        return int(pltpu.get_tpu_info().vmem_capacity_bytes)
    except Exception:                   # host-side heuristic only
        return 64 * 1024 * 1024         # conservative (v7x per-core VMEM)


# ---------------------------------------------------------------------------
# Parameter initialization (mirrors BayesianLinearLayer.init_parameters):
#   weights ~ N(0, prior_stdv),  prior_stdv = 1/sqrt(in_features)
#   bias    ~ N(0, 1)
#   logvars ~ N(-9, 1e-2)
# ---------------------------------------------------------------------------
def init_bayesian_linear(key, in_dim, out_dim):
    k1, k2, k3, k4 = jax.random.split(key, 4)
    prior_stdv = 1.0 / math.sqrt(in_dim)
    return {
        "weights": jax.random.normal(k1, (out_dim, in_dim), jnp.float32) * prior_stdv,
        "bias": jax.random.normal(k2, (out_dim,), jnp.float32),
        "weights_logvar": -9.0 + 1e-2 * jax.random.normal(k3, (out_dim, in_dim), jnp.float32),
        "bias_logvar": -9.0 + 1e-2 * jax.random.normal(k4, (out_dim,), jnp.float32),
        "prior_stdv": prior_stdv,
    }


def init_bayesian_nn(key, ip_dim, op_dim, num_nodes, num_layers):
    keys = jax.random.split(key, num_layers + 1)
    layers = [init_bayesian_linear(keys[0], ip_dim, num_nodes)]
    for i in range(num_layers - 1):
        layers.append(init_bayesian_linear(keys[1 + i], num_nodes, num_nodes))
    layers.append(init_bayesian_linear(keys[num_layers], num_nodes, op_dim))
    return layers


# ---------------------------------------------------------------------------
# One-time parameter prep (hoisted out of the forward pass):
#   * weights transposed to (in, out), exp(logvar) precomputed
#   * mean/variance weights concatenated into one (in_pad, 2*out_pad) bf16 slab
#     and the two bias rows into one (2, out_pad) fp32 slab per layer
#   * zero-padded so every feature dim is a multiple of 128 lanes (exact for
#     this math: padded columns give mu = var = act = 0)
#   bf16 weights run the MXU at native rate and halve HBM/VMEM bytes; the
#   accumulation and the epilogue stay fp32.
# ---------------------------------------------------------------------------
def prepare_params(layers):
    prepped = []
    for lyr in layers:
        out_dim, in_dim = lyr["weights"].shape
        in_pad = _round_up(in_dim, _LANE)
        out_pad = _round_up(out_dim, _LANE)
        wt = jnp.zeros((in_pad, out_pad), jnp.float32)
        wt = wt.at[:in_dim, :out_dim].set(jnp.asarray(lyr["weights"], jnp.float32).T)
        wv = jnp.zeros((in_pad, out_pad), jnp.float32)
        wv = wv.at[:in_dim, :out_dim].set(
            jnp.exp(jnp.asarray(lyr["weights_logvar"], jnp.float32)).T)
        w_cat = jnp.concatenate([wt, wv], axis=1).astype(jnp.bfloat16)   # (in_pad, 2*out_pad)
        b = jnp.zeros((1, out_pad), jnp.float32)
        b = b.at[0, :out_dim].set(jnp.asarray(lyr["bias"], jnp.float32))
        bv = jnp.zeros((1, out_pad), jnp.float32)
        bv = bv.at[0, :out_dim].set(jnp.exp(jnp.asarray(lyr["bias_logvar"], jnp.float32)))
        b_cat = jnp.concatenate([b, bv], axis=0)                          # (2, out_pad) fp32
        prepped.append({
            "w_cat": w_cat, "b_cat": b_cat,
            "in_dim": in_dim, "out_dim": out_dim,
            "in_pad": in_pad, "out_pad": out_pad,
            "prior_stdv": float(lyr["prior_stdv"]),
        })
    return prepped


def _eps_layout(prepped):
    offs, total = [], 0
    for p in prepped:
        offs.append(total)
        total += p["out_pad"]
    return offs, total


def sample_eps(prepped, batch_pad, key, do_sample=True):
    """All layers' local-reparameterization noise in one lane-dense bf16 buffer
    (single RNG dispatch, half the HBM bytes of fp32).  do_sample=False takes
    the mean path for EVERY layer (eps = 0; fc_out still gets * prior_stdv),
    matching BayesianNN.forward passing do_sample to all layers."""
    _, total = _eps_layout(prepped)
    if do_sample:
        eps = jax.random.normal(key, (batch_pad, total), jnp.float32)
    else:
        eps = jnp.zeros((batch_pad, total), jnp.float32)
    return eps.astype(jnp.bfloat16)


# ---------------------------------------------------------------------------
# Fused kernel: the whole MLP in one pallas_call.  Static Python loop over the
# (static) layer count; both matmuls hit the MXU in bf16 with fp32 accumulate,
# sqrt/tanh ride the EUP slot, activations stay in VMEM/vregs between layers.
# ---------------------------------------------------------------------------
def _make_fused_kernel(num_linear, eps_offsets, out_pads, activation, out_scale):
    def kernel(x_ref, eps_ref, *rest):
        o_ref = rest[-1]
        h = x_ref[...]                                     # fp32 activations
        for l in range(num_linear):
            w_ref = rest[2 * l]                            # (in_pad, 2*out_pad) bf16
            bc = rest[2 * l + 1][...]                      # (2, out_pad) fp32
            npad = out_pads[l]
            hb = h.astype(jnp.bfloat16)                    # bf16 MXU operands,
            hsq = (h * h).astype(jnp.bfloat16)             # fp32 accumulation
            mu = jnp.dot(hb, w_ref[:, :npad],
                         preferred_element_type=jnp.float32) + bc[0:1, :]
            var = jnp.dot(hsq, w_ref[:, npad:],
                          preferred_element_type=jnp.float32) + bc[1:2, :]
            off = eps_offsets[l]
            eps = eps_ref[:, off:off + npad].astype(jnp.float32)   # static, 128-aligned
            a = mu + jnp.sqrt(var) * eps
            if l == num_linear - 1:
                a = a * out_scale                          # fc_out: scale_variances=True
            elif activation == "relu":
                a = jnp.maximum(a, 0.0)
            else:                                          # tanh
                a = jnp.tanh(a)
            h = a
        o_ref[...] = h
    return kernel


def bayesian_nn_forward(prepped, x, *, key=None, eps=None, do_sample=True,
                        activation_type="relu"):
    """BayesianNN.forward: fc1 -> act -> hidden* -> act -> fc_out(scale_variances=True)."""
    if activation_type not in ("relu", "tanh"):
        raise ValueError("Activation Type not supported")
    B, ip_dim = x.shape
    assert ip_dim == prepped[0]["in_dim"]
    num_linear = len(prepped)
    offs, eps_total = _eps_layout(prepped)
    out_pads = [p["out_pad"] for p in prepped]

    batch_pad, tile_b = _pad_batch(B)
    in_pad0 = prepped[0]["in_pad"]
    out_pad_last = out_pads[-1]

    x_pad = jnp.zeros((batch_pad, in_pad0), jnp.float32)
    x_pad = x_pad.at[:B, :ip_dim].set(jnp.asarray(x, jnp.float32))

    if eps is None:
        if key is None:
            raise ValueError("provide either `eps` or `key`")
        eps = sample_eps(prepped, batch_pad, key, do_sample=do_sample)
    assert eps.shape == (batch_pad, eps_total) and eps.dtype == jnp.bfloat16

    kernel = _make_fused_kernel(num_linear, tuple(offs), tuple(out_pads),
                                activation_type, prepped[-1]["prior_stdv"])

    # Streaming operands (batch-tiled): x, eps, output.  Parameters use a
    # constant index_map (fetched once, VMEM-resident across batch tiles) and
    # are single-buffered -- they never change, so a second pipeline buffer
    # would just waste a full copy of every weight matrix in VMEM.
    in_specs = [pl.BlockSpec((tile_b, in_pad0), lambda i: (i, 0)),
                pl.BlockSpec((tile_b, eps_total), lambda i: (i, 0))]
    inputs = [x_pad, eps]
    for p in prepped:
        in_specs += [
            pl.BlockSpec((p["in_pad"], 2 * p["out_pad"]), lambda i: (0, 0),
                         pipeline_mode=pl.Buffered(1)),
            pl.BlockSpec((2, p["out_pad"]), lambda i: (0, 0),
                         pipeline_mode=pl.Buffered(1)),
        ]
        inputs += [p["w_cat"], p["b_cat"]]

    # VMEM budget: single-buffered bf16 weights + double-buffered streaming
    # tiles + headroom for elementwise temporaries (h, h*h, mu, var, eps, a),
    # clamped to the chip's physical VMEM.  For nets whose weights alone
    # approach that limit (v7x: 64 MiB/core) stream weights per layer
    # (emit_pipeline / N,K tiling with an fp32 accumulator) instead of raising
    # the limit further.
    param_bytes = sum(p["in_pad"] * 2 * p["out_pad"] * 2        # bf16 weights
                      + 2 * p["out_pad"] * 4 for p in prepped)  # fp32 biases
    stream_bytes = 2 * tile_b * (in_pad0 * 4 + eps_total * 2 + out_pad_last * 4)
    tmp_bytes = 6 * tile_b * max([in_pad0] + out_pads) * 4
    vmem_need = param_bytes + stream_bytes + tmp_bytes + (4 << 20)
    vmem_limit = int(min(max(vmem_need, 16 << 20),
                         int(0.8 * _physical_vmem_bytes())))

    out = pl.pallas_call(
        kernel,
        grid=(batch_pad // tile_b,),
        in_specs=in_specs,
        out_specs=pl.BlockSpec((tile_b, out_pad_last), lambda i: (i, 0)),
        out_shape=jax.ShapeDtypeStruct((batch_pad, out_pad_last), jnp.float32),
        compiler_params=pltpu.CompilerParams(
            dimension_semantics=("parallel",),   # shard batch tiles across TCs (v7x)
            vmem_limit_bytes=vmem_limit),
    )(*inputs)
    return out[:B, :prepped[-1]["out_dim"]]


# Pure-JAX reference (same math, same bf16 rounding of the matmul operands and
# eps, fp32 everywhere else) for correctness.
def _reference_forward(layers, x, eps_layers, activation_type="relu"):
    h = jnp.asarray(x, jnp.float32)
    n = len(layers)
    for i, lyr in enumerate(layers):
        wt = jnp.asarray(lyr["weights"], jnp.float32).T.astype(jnp.bfloat16)
        wv = jnp.exp(jnp.asarray(lyr["weights_logvar"], jnp.float32)).T.astype(jnp.bfloat16)
        hb = h.astype(jnp.bfloat16)
        hsq = (h * h).astype(jnp.bfloat16)
        mu = jnp.dot(hb, wt, preferred_element_type=jnp.float32) + lyr["bias"]
        var = jnp.dot(hsq, wv, preferred_element_type=jnp.float32) + jnp.exp(lyr["bias_logvar"])
        a = mu + jnp.sqrt(var) * eps_layers[i]
        if i == n - 1:
            h = a * lyr["prior_stdv"]
        elif activation_type == "relu":
            h = jnp.maximum(a, 0.0)
        else:
            h = jnp.tanh(a)
    return h


if __name__ == "__main__":
    # Small shapes consistent with the module: MLP ip_dim -> num_nodes -> ... -> op_dim.
    # batch=32 gives a 2-tile grid (exercises the megacore-parallel batch axis).
    # For Monte-Carlo inference, fold the S samples into the batch axis.
    batch, ip_dim, op_dim, num_nodes, num_layers = 32, 4, 2, 32, 2

    root = jax.random.PRNGKey(0)
    k_params, k_x, k_eps = jax.random.split(root, 3)

    layers = init_bayesian_nn(k_params, ip_dim, op_dim, num_nodes, num_layers)
    prepped = prepare_params(layers)     # one-time prep: transpose + exp(logvar) + pad + bf16
    x = jax.random.normal(k_x, (batch, ip_dim), jnp.float32)

    batch_pad, _ = _pad_batch(batch)
    eps = sample_eps(prepped, batch_pad, k_eps, do_sample=True)

    out = bayesian_nn_forward(prepped, x, eps=eps, activation_type="relu")
    out = jax.block_until_ready(out)

    offs, _ = _eps_layout(prepped)
    eps_layers = [eps[:batch, off:off + lyr["weights"].shape[0]].astype(jnp.float32)
                  for off, lyr in zip(offs, layers)]
    ref = _reference_forward(layers, x, eps_layers, activation_type="relu")

    assert out.shape == (batch, op_dim)
    assert bool(jnp.all(jnp.isfinite(out)))
    assert jnp.allclose(out, ref, atol=2e-3, rtol=2e-3), "Pallas output mismatch vs reference"

    print("KERNEL_OK")
</pallas_src>

<mosaic_0001>
module attributes {stable_mosaic.version = 11 : i64} {
  func.func @kernel(%arg0: i32, %arg1: memref<16x128xf32, #tpu.memory_space<vmem>>, %arg2: memref<16x384xbf16, #tpu.memory_space<vmem>>, %arg3: memref<128x256xbf16, #tpu.memory_space<vmem>>, %arg4: memref<2x128xf32, #tpu.memory_space<vmem>>, %arg5: memref<128x256xbf16, #tpu.memory_space<vmem>>, %arg6: memref<2x128xf32, #tpu.memory_space<vmem>>, %arg7: memref<128x256xbf16, #tpu.memory_space<vmem>>, %arg8: memref<2x128xf32, #tpu.memory_space<vmem>>, %arg9: memref<16x128xf32, #tpu.memory_space<vmem>>) attributes {dimension_semantics = [#tpu.dimension_semantics<parallel>], iteration_bounds = array<i64: 2>, scalar_prefetch = 0 : i64, scratch_operands = 0 : i64, tpu.core_type = #tpu.core_type<tc>, window_params = [{transform_indices = @transform_0, window_bounds = array<i64: 16, 128>}, {transform_indices = @transform_1, window_bounds = array<i64: 16, 384>}, {pipeline_mode = #tpu.pipeline_mode<synchronous>, transform_indices = @transform_2, window_bounds = array<i64: 128, 256>}, {pipeline_mode = #tpu.pipeline_mode<synchronous>, transform_indices = @transform_3, window_bounds = array<i64: 2, 128>}, {pipeline_mode = #tpu.pipeline_mode<synchronous>, transform_indices = @transform_4, window_bounds = array<i64: 128, 256>}, {pipeline_mode = #tpu.pipeline_mode<synchronous>, transform_indices = @transform_5, window_bounds = array<i64: 2, 128>}, {pipeline_mode = #tpu.pipeline_mode<synchronous>, transform_indices = @transform_6, window_bounds = array<i64: 128, 256>}, {pipeline_mode = #tpu.pipeline_mode<synchronous>, transform_indices = @transform_7, window_bounds = array<i64: 2, 128>}, {transform_indices = @transform_8, window_bounds = array<i64: 16, 128>}]} {
    %c0 = arith.constant 0 : index
    %c0_0 = arith.constant 0 : index
    %0 = vector.load %arg1[%c0, %c0_0] : memref<16x128xf32, #tpu.memory_space<vmem>>, vector<16x128xf32>
    %c0_1 = arith.constant 0 : index
    %c0_2 = arith.constant 0 : index
    %1 = vector.load %arg4[%c0_1, %c0_2] : memref<2x128xf32, #tpu.memory_space<vmem>>, vector<2x128xf32>
    %2 = arith.truncf %0 : vector<16x128xf32> to vector<16x128xbf16>
    %3 = arith.mulf %0, %0 : vector<16x128xf32>
    %4 = arith.truncf %3 : vector<16x128xf32> to vector<16x128xbf16>
    %c0_3 = arith.constant 0 : index
    %c0_4 = arith.constant 0 : index
    %5 = vector.load %arg3[%c0_3, %c0_4] : memref<128x256xbf16, #tpu.memory_space<vmem>>, vector<128x128xbf16>
    %cst = arith.constant dense<0.000000e+00> : vector<16x128xf32>
    %6 = tpu.matmul %2, %5, %cst {dimension_numbers = #tpu.dot_dimension_numbers<[1], [0], [0], [1], [0, 0, 1, 1], [], []>} : vector<16x128xbf16>, vector<128x128xbf16>, vector<16x128xf32> -> vector<16x128xf32>
    %7 = vector.extract_strided_slice %1 {offsets = [0, 0], sizes = [1, 128], strides = [1, 1]} : vector<2x128xf32> to vector<1x128xf32>
    %8 = vector.broadcast %7 : vector<1x128xf32> to vector<16x128xf32>
    %9 = arith.addf %6, %8 : vector<16x128xf32>
    %c0_5 = arith.constant 0 : index
    %c128 = arith.constant 128 : index
    %10 = vector.load %arg3[%c0_5, %c128] : memref<128x256xbf16, #tpu.memory_space<vmem>>, vector<128x128xbf16>
    %cst_6 = arith.constant dense<0.000000e+00> : vector<16x128xf32>
    %11 = tpu.matmul %4, %10, %cst_6 {dimension_numbers = #tpu.dot_dimension_numbers<[1], [0], [0], [1], [0, 0, 1, 1], [], []>} : vector<16x128xbf16>, vector<128x128xbf16>, vector<16x128xf32> -> vector<16x128xf32>
    %12 = vector.extract_strided_slice %1 {offsets = [1, 0], sizes = [1, 128], strides = [1, 1]} : vector<2x128xf32> to vector<1x128xf32>
    %13 = vector.broadcast %12 : vector<1x128xf32> to vector<16x128xf32>
    %14 = arith.addf %11, %13 : vector<16x128xf32>
    %c0_7 = arith.constant 0 : index
    %c0_8 = arith.constant 0 : index
    %15 = vector.load %arg2[%c0_7, %c0_8] : memref<16x384xbf16, #tpu.memory_space<vmem>>, vector<16x128xbf16>
    %16 = arith.extf %15 : vector<16x128xbf16> to vector<16x128xf32>
    %17 = math.sqrt %14 : vector<16x128xf32>
    %18 = arith.mulf %17, %16 : vector<16x128xf32>
    %19 = arith.addf %9, %18 : vector<16x128xf32>
    %cst_9 = arith.constant 0.000000e+00 : f32
    %20 = vector.broadcast %cst_9 : f32 to vector<16x128xf32>
    %21 = arith.maximumf %19, %20 : vector<16x128xf32>
    %c0_10 = arith.constant 0 : index
    %c0_11 = arith.constant 0 : index
    %22 = vector.load %arg6[%c0_10, %c0_11] : memref<2x128xf32, #tpu.memory_space<vmem>>, vector<2x128xf32>
    %23 = arith.truncf %21 : vector<16x128xf32> to vector<16x128xbf16>
    %24 = arith.mulf %21, %21 : vector<16x128xf32>
    %25 = arith.truncf %24 : vector<16x128xf32> to vector<16x128xbf16>
    %c0_12 = arith.constant 0 : index
    %c0_13 = arith.constant 0 : index
    %26 = vector.load %arg5[%c0_12, %c0_13] : memref<128x256xbf16, #tpu.memory_space<vmem>>, vector<128x128xbf16>
    %cst_14 = arith.constant dense<0.000000e+00> : vector<16x128xf32>
    %27 = tpu.matmul %23, %26, %cst_14 {dimension_numbers = #tpu.dot_dimension_numbers<[1], [0], [0], [1], [0, 0, 1, 1], [], []>} : vector<16x128xbf16>, vector<128x128xbf16>, vector<16x128xf32> -> vector<16x128xf32>
    %28 = vector.extract_strided_slice %22 {offsets = [0, 0], sizes = [1, 128], strides = [1, 1]} : vector<2x128xf32> to vector<1x128xf32>
    %29 = vector.broadcast %28 : vector<1x128xf32> to vector<16x128xf32>
    %30 = arith.addf %27, %29 : vector<16x128xf32>
    %c0_15 = arith.constant 0 : index
    %c128_16 = arith.constant 128 : index
    %31 = vector.load %arg5[%c0_15, %c128_16] : memref<128x256xbf16, #tpu.memory_space<vmem>>, vector<128x128xbf16>
    %cst_17 = arith.constant dense<0.000000e+00> : vector<16x128xf32>
    %32 = tpu.matmul %25, %31, %cst_17 {dimension_numbers = #tpu.dot_dimension_numbers<[1], [0], [0], [1], [0, 0, 1, 1], [], []>} : vector<16x128xbf16>, vector<128x128xbf16>, vector<16x128xf32> -> vector<16x128xf32>
    %33 = vector.extract_strided_slice %22 {offsets = [1, 0], sizes = [1, 128], strides = [1, 1]} : vector<2x128xf32> to vector<1x128xf32>
    %34 = vector.broadcast %33 : vector<1x128xf32> to vector<16x128xf32>
    %35 = arith.addf %32, %34 : vector<16x128xf32>
    %c0_18 = arith.constant 0 : index
    %c128_19 = arith.constant 128 : index
    %36 = vector.load %arg2[%c0_18, %c128_19] : memref<16x384xbf16, #tpu.memory_space<vmem>>, vector<16x128xbf16>
    %37 = arith.extf %36 : vector<16x128xbf16> to vector<16x128xf32>
    %38 = math.sqrt %35 : vector<16x128xf32>
    %39 = arith.mulf %38, %37 : vector<16x128xf32>
    %40 = arith.addf %30, %39 : vector<16x128xf32>
    %cst_20 = arith.constant 0.000000e+00 : f32
    %41 = vector.broadcast %cst_20 : f32 to vector<16x128xf32>
    %42 = arith.maximumf %40, %41 : vector<16x128xf32>
    %c0_21 = arith.constant 0 : index
    %c0_22 = arith.constant 0 : index
    %43 = vector.load %arg8[%c0_21, %c0_22] : memref<2x128xf32, #tpu.memory_space<vmem>>, vector<2x128xf32>
    %44 = arith.truncf %42 : vector<16x128xf32> to vector<16x128xbf16>
    %45 = arith.mulf %42, %42 : vector<16x128xf32>
    %46 = arith.truncf %45 : vector<16x128xf32> to vector<16x128xbf16>
    %c0_23 = arith.constant 0 : index
    %c0_24 = arith.constant 0 : index
    %47 = vector.load %arg7[%c0_23, %c0_24] : memref<128x256xbf16, #tpu.memory_space<vmem>>, vector<128x128xbf16>
    %cst_25 = arith.constant dense<0.000000e+00> : vector<16x128xf32>
    %48 = tpu.matmul %44, %47, %cst_25 {dimension_numbers = #tpu.dot_dimension_numbers<[1], [0], [0], [1], [0, 0, 1, 1], [], []>} : vector<16x128xbf16>, vector<128x128xbf16>, vector<16x128xf32> -> vector<16x128xf32>
    %49 = vector.extract_strided_slice %43 {offsets = [0, 0], sizes = [1, 128], strides = [1, 1]} : vector<2x128xf32> to vector<1x128xf32>
    %50 = vector.broadcast %49 : vector<1x128xf32> to vector<16x128xf32>
    %51 = arith.addf %48, %50 : vector<16x128xf32>
    %c0_26 = arith.constant 0 : index
    %c128_27 = arith.constant 128 : index
    %52 = vector.load %arg7[%c0_26, %c128_27] : memref<128x256xbf16, #tpu.memory_space<vmem>>, vector<128x128xbf16>
    %cst_28 = arith.constant dense<0.000000e+00> : vector<16x128xf32>
    %53 = tpu.matmul %46, %52, %cst_28 {dimension_numbers = #tpu.dot_dimension_numbers<[1], [0], [0], [1], [0, 0, 1, 1], [], []>} : vector<16x128xbf16>, vector<128x128xbf16>, vector<16x128xf32> -> vector<16x128xf32>
    %54 = vector.extract_strided_slice %43 {offsets = [1, 0], sizes = [1, 128], strides = [1, 1]} : vector<2x128xf32> to vector<1x128xf32>
    %55 = vector.broadcast %54 : vector<1x128xf32> to vector<16x128xf32>
    %56 = arith.addf %53, %55 : vector<16x128xf32>
    %c0_29 = arith.constant 0 : index
    %c256 = arith.constant 256 : index
    %57 = vector.load %arg2[%c0_29, %c256] : memref<16x384xbf16, #tpu.memory_space<vmem>>, vector<16x128xbf16>
    %58 = arith.extf %57 : vector<16x128xbf16> to vector<16x128xf32>
    %59 = math.sqrt %56 : vector<16x128xf32>
    %60 = arith.mulf %59, %58 : vector<16x128xf32>
    %61 = arith.addf %51, %60 : vector<16x128xf32>
    %cst_30 = arith.constant 0.176776692 : f32
    %62 = vector.broadcast %cst_30 : f32 to vector<16x128xf32>
    %63 = arith.mulf %61, %62 : vector<16x128xf32>
    %c0_31 = arith.constant 0 : index
    %c0_32 = arith.constant 0 : index
    %64 = vector.load %arg9[%c0_31, %c0_32] : memref<16x128xf32, #tpu.memory_space<vmem>>, vector<16x128xf32>
    tpu.vector_store %arg9[%c0_31, %c0_32], %63 {strides = array<i32>} : memref<16x128xf32, #tpu.memory_space<vmem>>, vector<16x128xf32>,
    return
  }
  func.func @transform_0(%arg0: i32) -> (i32, i32) {
    %c0_i32 = arith.constant 0 : i32
    %c0_i32_0 = arith.constant 0 : i32
    return %arg0, %c0_i32 : i32, i32
  }
  func.func @transform_1(%arg0: i32) -> (i32, i32) {
    %c0_i32 = arith.constant 0 : i32
    %c0_i32_0 = arith.constant 0 : i32
    return %arg0, %c0_i32 : i32, i32
  }
  func.func @transform_2(%arg0: i32) -> (i32, i32) {
    %c0_i32 = arith.constant 0 : i32
    %c0_i32_0 = arith.constant 0 : i32
    %c0_i32_1 = arith.constant 0 : i32
    return %c0_i32, %c0_i32_0 : i32, i32
  }
  func.func @transform_3(%arg0: i32) -> (i32, i32) {
    %c0_i32 = arith.constant 0 : i32
    %c0_i32_0 = arith.constant 0 : i32
    %c0_i32_1 = arith.constant 0 : i32
    return %c0_i32, %c0_i32_0 : i32, i32
  }
  func.func @transform_4(%arg0: i32) -> (i32, i32) {
    %c0_i32 = arith.constant 0 : i32
    %c0_i32_0 = arith.constant 0 : i32
    %c0_i32_1 = arith.constant 0 : i32
    return %c0_i32, %c0_i32_0 : i32, i32
  }
  func.func @transform_5(%arg0: i32) -> (i32, i32) {
    %c0_i32 = arith.constant 0 : i32
    %c0_i32_0 = arith.constant 0 : i32
    %c0_i32_1 = arith.constant 0 : i32
    return %c0_i32, %c0_i32_0 : i32, i32
  }
  func.func @transform_6(%arg0: i32) -> (i32, i32) {
    %c0_i32 = arith.constant 0 : i32
    %c0_i32_0 = arith.constant 0 : i32
    %c0_i32_1 = arith.constant 0 : i32
    return %c0_i32, %c0_i32_0 : i32, i32
  }
  func.func @transform_7(%arg0: i32) -> (i32, i32) {
    %c0_i32 = arith.constant 0 : i32
    %c0_i32_0 = arith.constant 0 : i32
    %c0_i32_1 = arith.constant 0 : i32
    return %c0_i32, %c0_i32_0 : i32, i32
  }
  func.func @transform_8(%arg0: i32) -> (i32, i32) {
    %c0_i32 = arith.constant 0 : i32
    %c0_i32_0 = arith.constant 0 : i32
    return %arg0, %c0_i32 : i32, i32
  }
}

</mosaic_0001>

<llo_original>
// kernel: tpu_custom_call.1
$region0: #{tpu_custom_call.1}
  #allocation0 [shape = 'u32[]', space=smem, size = 0x4, offset = 0x4, fixed_abs, tag = 'smem constant byte address 0x4 - core index']
  #allocation1 [shape = 'u32[144,128]{1,0:T(1,128)}', space=vmem, size = 0x12000, scoped, tag = 'internal scratch']
  %s0 = inlined_call_operand.hbm [shape: f32[32,128], index: 0, kind: input, shape index: {}]
  %s1 = inlined_call_operand.hbm [shape: bf16[32,384], index: 1, kind: input, shape index: {}]
  %s2 = inlined_call_operand.hbm [shape: bf16[128,256], index: 2, kind: input, shape index: {}]
  %s3 = inlined_call_operand.vmem [shape: f32[2,128], index: 3, kind: input, shape index: {}]
  %s4 = inlined_call_operand.hbm [shape: bf16[128,256], index: 4, kind: input, shape index: {}]
  %s5 = inlined_call_operand.vmem [shape: f32[2,128], index: 5, kind: input, shape index: {}]
  %s6 = inlined_call_operand.hbm [shape: bf16[128,256], index: 6, kind: input, shape index: {}]
  %s7 = inlined_call_operand.vmem [shape: f32[2,128], index: 7, kind: input, shape index: {}]
  %s8 = inlined_call_operand.hbm [shape: f32[32,128], index: 8, kind: output, shape index: {}]
  %s9 = sld [smem:[#allocation0]]
  $region85: #{tpu_custom_call.1} parent=0
    _
  %s11 = ssub.s32 1, %s9
  %s12 = scalar_select 0, %s11, %s9
  $region1: #{tpu_custom_call.1} parent=0
    #allocation2 [shape = 'u8[16384]{0}', space=vmem, size = 0x4000, scoped, tag = 'input window, operand 0']
    #allocation3 [shape = 's32[2]{0}', space=sflag, size = 0x8, scoped, tag = 'scoped memory for tpu_custom_call.1']
    #allocation4 [shape = 's32[2]{0}', space=sflag, size = 0x8, scoped, tag = 'scoped memory for tpu_custom_call.1']
    #allocation5 [shape = 'u8[24576]{0}', space=vmem, size = 0x6000, scoped, tag = 'input window, operand 1']
    #allocation6 [shape = 's32[2]{0}', space=sflag, size = 0x8, scoped, tag = 'scoped memory for tpu_custom_call.1']
    #allocation7 [shape = 'u8[65536]{0}', space=vmem, size = 0x10000, scoped, tag = 'input window, operand 2, single buffered']
    #allocation8 [shape = 'u8[65536]{0}', space=vmem, size = 0x10000, scoped, tag = 'input window, operand 4, single buffered']
    #allocation9 [shape = 's32[1]{0}', space=sflag, size = 0x4, scoped, tag = 'scoped memory for tpu_custom_call.1']
    #allocation10 [shape = 'u8[65536]{0}', space=vmem, size = 0x10000, scoped, tag = 'input window, operand 6, single buffered']
    #allocation11 [shape = 'u8[16384]{0}', space=vmem, size = 0x4000, scoped, tag = 'output window, operand 0']
    %13 = vsyncpa [#allocation3], 0
    %s14 = scalar_lea.sflag [#allocation3], 1
    %15 = vsyncpa %s14, 0
    %16 = vsyncpa [#allocation6], 0
    %s17 = scalar_lea.sflag [#allocation6], 1
    %18 = vsyncpa %s17, 0
    %19 = vsyncpa [#allocation9], 0
    %20 = vsyncpa [#allocation4], 0
    %s21 = scalar_lea.sflag [#allocation4], 1
    %22 = vsyncpa %s21, 0
    loop: start=0, step=1, limit=4
    $region2: #{tpu_custom_call.1} parent=1 // loop_pre_header
      _
    $region3: #{tpu_custom_call.1} parent=1 // loop_header
      %s24 = sphi 0, %s28
      %p25 = scmp.ge.s32.totalorder %s24, 4
      %s34 = sphi 0, %s36
      %s37 = sphi 0, %s34
      %s38 = sphi 0, %s37
      %s54 = sphi 0, %s38
      %s60 = sphi 0, %s62
      %s63 = sphi 0, %s60
      %s64 = sphi 0, %s63
      %s80 = sphi 0, %s64
      %s84 = sphi 0, %s84
      %s86 = sphi 0, %s84
      %s87 = sphi 0, %s86
      %s101 = sphi 0, %s87
      %s105 = sphi 0, %s105
      %s107 = sphi 0, %s105
      %s108 = sphi 0, %s107
      %s122 = sphi 0, %s108
      %s126 = sphi 0, %s126
      %s128 = sphi 0, %s126
      %s129 = sphi 0, %s128
      %s143 = sphi 0, %s129
      %s147 = sphi 0, %s147
      %s149 = sphi 0, %s147
      %s150 = sphi 0, %s149
      %s164 = sphi 0, %s150
      %s168 = sphi 0, %s168
      %s170 = sphi 0, %s168
      %s171 = sphi 0, %s170
      %s185 = sphi 0, %s171
      %s189 = sphi 0, %s189
      %s191 = sphi 0, %s189
      %s192 = sphi 0, %s191
      %s206 = sphi 0, %s192
      %s212 = sphi 0, %s214
      %s215 = sphi 0, %s212
      %s216 = sphi 0, %s215
      %s232 = sphi 0, %s216
    $region4: #{tpu_custom_call.1} parent=1 // loop_header_branch
      %27 = sbr.rel (%p25) target = $region8
    $region5: #{tpu_custom_call.1} parent=1 // loop_body
      %s29 = ssub.s32 %s24, 1
      %s30 = ssub.s32 %s24, 2
      %s31 = sadd.s32 %s24, 1
      %s32 = ssub.s32 %s24, %s31
      %p33 = scmp.eq.s32.totalorder %s32, 0
      %s35 = sadd.s32 %s34, 1
      %s36 = scalar_select %p33, %s34, %s35
      %p39 = pneg %p33
      %p40 = scmp.eq.s32.totalorder %s24, 1
      %p41 = por %p39, %p40
      %p42 = scmp.ne.s32.totalorder %s34, %s37
      %p43 = scmp.eq.s32.totalorder %s24, 0
      %p44 = por %p42, %p43
      %p45 = scmp.ne.s32.totalorder %s34, %s37
      %p46 = scmp.eq.s32.totalorder %s29, 1
      %p47 = por %p45, %p46
      %p48 = scmp.ne.s32.totalorder %s37, %s38
      %p49 = scmp.eq.s32.totalorder %s29, 0
      %p50 = por %p48, %p49
      %p51 = scmp.ne.s32.totalorder %s37, %s38
      %p52 = scmp.eq.s32.totalorder %s30, 1
      %p53 = por %p51, %p52
      %p55 = scmp.ne.s32.totalorder %s38, %s54
      %p56 = scmp.eq.s32.totalorder %s30, 0
      %p57 = por %p55, %p56
      %s58 = ssub.s32 %s24, %s31
      %p59 = scmp.eq.s32.totalorder %s58, 0
      %s61 = sadd.s32 %s60, 1
      %s62 = scalar_select %p59, %s60, %s61
      %p65 = pneg %p59
      %p66 = scmp.eq.s32.totalorder %s24, 1
      %p67 = por %p65, %p66
      %p68 = scmp.ne.s32.totalorder %s60, %s63
      %p69 = scmp.eq.s32.totalorder %s24, 0
      %p70 = por %p68, %p69
      %p71 = scmp.ne.s32.totalorder %s60, %s63
      %p72 = scmp.eq.s32.totalorder %s29, 1
      %p73 = por %p71, %p72
      %p74 = scmp.ne.s32.totalorder %s63, %s64
      %p75 = scmp.eq.s32.totalorder %s29, 0
      %p76 = por %p74, %p75
      %p77 = scmp.ne.s32.totalorder %s63, %s64
      %p78 = scmp.eq.s32.totalorder %s30, 1
      %p79 = por %p77, %p78
      %p81 = scmp.ne.s32.totalorder %s64, %s80
      %p82 = scmp.eq.s32.totalorder %s30, 0
      %p83 = por %p81, %p82
      %s85 = sadd.s32 %s84, 1
      %p88 = scmp.eq.s32.totalorder %s24, 1
      %p89 = scmp.ne.s32.totalorder %s84, %s86
      %p90 = scmp.eq.s32.totalorder %s24, 0
      %p91 = por %p89, %p90
      %p92 = scmp.ne.s32.totalorder %s84, %s86
      %p93 = scmp.eq.s32.totalorder %s29, 1
      %p94 = por %p92, %p93
      %p95 = scmp.ne.s32.totalorder %s86, %s87
      %p96 = scmp.eq.s32.totalorder %s29, 0
      %p97 = por %p95, %p96
      %p98 = scmp.ne.s32.totalorder %s86, %s87
      %p99 = scmp.eq.s32.totalorder %s30, 1
      %p100 = por %p98, %p99
      %p102 = scmp.ne.s32.totalorder %s87, %s101
      %p103 = scmp.eq.s32.totalorder %s30, 0
      %p104 = por %p102, %p103
      %s106 = sadd.s32 %s105, 1
      %p109 = scmp.eq.s32.totalorder %s24, 1
      %p110 = scmp.ne.s32.totalorder %s105, %s107
      %p111 = scmp.eq.s32.totalorder %s24, 0
      %p112 = por %p110, %p111
      %p113 = scmp.ne.s32.totalorder %s105, %s107
      %p114 = scmp.eq.s32.totalorder %s29, 1
      %p115 = por %p113, %p114
      %p116 = scmp.ne.s32.totalorder %s107, %s108
      %p117 = scmp.eq.s32.totalorder %s29, 0
      %p118 = por %p116, %p117
      %p119 = scmp.ne.s32.totalorder %s107, %s108
      %p120 = scmp.eq.s32.totalorder %s30, 1
      %p121 = por %p119, %p120
      %p123 = scmp.ne.s32.totalorder %s108, %s122
      %p124 = scmp.eq.s32.totalorder %s30, 0
      %p125 = por %p123, %p124
      %s127 = sadd.s32 %s126, 1
      %p130 = scmp.eq.s32.totalorder %s24, 1
      %p131 = scmp.ne.s32.totalorder %s126, %s128
      %p132 = scmp.eq.s32.totalorder %s24, 0
      %p133 = por %p131, %p132
      %p134 = scmp.ne.s32.totalorder %s126, %s128
      %p135 = scmp.eq.s32.totalorder %s29, 1
      %p136 = por %p134, %p135
      %p137 = scmp.ne.s32.totalorder %s128, %s129
      %p138 = scmp.eq.s32.totalorder %s29, 0
      %p139 = por %p137, %p138
      %p140 = scmp.ne.s32.totalorder %s128, %s129
      %p141 = scmp.eq.s32.totalorder %s30, 1
      %p142 = por %p140, %p141
      %p144 = scmp.ne.s32.totalorder %s129, %s143
      %p145 = scmp.eq.s32.totalorder %s30, 0
      %p146 = por %p144, %p145
      %s148 = sadd.s32 %s147, 1
      %p151 = scmp.eq.s32.totalorder %s24, 1
      %p152 = scmp.ne.s32.totalorder %s147, %s149
      %p153 = scmp.eq.s32.totalorder %s24, 0
      %p154 = por %p152, %p153
      %p155 = scmp.ne.s32.totalorder %s147, %s149
      %p156 = scmp.eq.s32.totalorder %s29, 1
      %p157 = por %p155, %p156
      %p158 = scmp.ne.s32.totalorder %s149, %s150
      %p159 = scmp.eq.s32.totalorder %s29, 0
      %p160 = por %p158, %p159
      %p161 = scmp.ne.s32.totalorder %s149, %s150
      %p162 = scmp.eq.s32.totalorder %s30, 1
      %p163 = por %p161, %p162
      %p165 = scmp.ne.s32.totalorder %s150, %s164
      %p166 = scmp.eq.s32.totalorder %s30, 0
      %p167 = por %p165, %p166
      %s169 = sadd.s32 %s168, 1
      %p172 = scmp.eq.s32.totalorder %s24, 1
      %p173 = scmp.ne.s32.totalorder %s168, %s170
      %p174 = scmp.eq.s32.totalorder %s24, 0
      %p175 = por %p173, %p174
      %p176 = scmp.ne.s32.totalorder %s168, %s170
      %p177 = scmp.eq.s32.totalorder %s29, 1
      %p178 = por %p176, %p177
      %p179 = scmp.ne.s32.totalorder %s170, %s171
      %p180 = scmp.eq.s32.totalorder %s29, 0
      %p181 = por %p179, %p180
      %p182 = scmp.ne.s32.totalorder %s170, %s171
      %p183 = scmp.eq.s32.totalorder %s30, 1
      %p184 = por %p182, %p183
      %p186 = scmp.ne.s32.totalorder %s171, %s185
      %p187 = scmp.eq.s32.totalorder %s30, 0
      %p188 = por %p186, %p187
      %s190 = sadd.s32 %s189, 1
      %p193 = scmp.eq.s32.totalorder %s24, 1
      %p194 = scmp.ne.s32.totalorder %s189, %s191
      %p195 = scmp.eq.s32.totalorder %s24, 0
      %p196 = por %p194, %p195
      %p197 = scmp.ne.s32.totalorder %s189, %s191
      %p198 = scmp.eq.s32.totalorder %s29, 1
      %p199 = por %p197, %p198
      %p200 = scmp.ne.s32.totalorder %s191, %s192
      %p201 = scmp.eq.s32.totalorder %s29, 0
      %p202 = por %p200, %p201
      %p203 = scmp.ne.s32.totalorder %s191, %s192
      %p204 = scmp.eq.s32.totalorder %s30, 1
      %p205 = por %p203, %p204
      %p207 = scmp.ne.s32.totalorder %s192, %s206
      %p208 = scmp.eq.s32.totalorder %s30, 0
      %p209 = por %p207, %p208
      %s210 = ssub.s32 %s24, %s31
      %p211 = scmp.eq.s32.totalorder %s210, 0
      %s213 = sadd.s32 %s212, 1
      %s214 = scalar_select %p211, %s212, %s213
      %p217 = pneg %p211
      %p218 = scmp.eq.s32.totalorder %s24, 1
      %p219 = por %p217, %p218
      %p220 = scmp.ne.s32.totalorder %s212, %s215
      %p221 = scmp.eq.s32.totalorder %s24, 0
      %p222 = por %p220, %p221
      %p223 = scmp.ne.s32.totalorder %s212, %s215
      %p224 = scmp.eq.s32.totalorder %s29, 1
      %p225 = por %p223, %p224
      %p226 = scmp.ne.s32.totalorder %s215, %s216
      %p227 = scmp.eq.s32.totalorder %s29, 0
      %p228 = por %p226, %p227
      %p229 = scmp.ne.s32.totalorder %s215, %s216
      %p230 = scmp.eq.s32.totalorder %s30, 1
      %p231 = por %p229, %p230
      %p233 = scmp.ne.s32.totalorder %s216, %s232
      %p234 = scmp.eq.s32.totalorder %s30, 0
      %p235 = por %p233, %p234
      %p236 = scmp.le.s32.totalorder 1, %s24
      %p237 = scmp.lt.s32.totalorder %s24, 3
      %p238 = pnand %p236, %p237
      %p239 = pneg %p238
      // Predicated region
      $region9: #{tpu_custom_call.1} parent=5 // pred_check
        _
      $region10: #{tpu_custom_call.1} parent=5 // pred_check_branch
        %241 = sbr.rel (%p238) target = $region12
      $region11: #{tpu_custom_call.1} parent=5 // pred_region
        %s242 = ssub.s32 %s24, 1
        // Predicated region
        $region13: #{tpu_custom_call.1} parent=11 // pred_check
          %p243 = pneg %p97
        $region14: #{tpu_custom_call.1} parent=11 // pred_check_branch
          %245 = sbr.rel (%p243) target = $region16
        $region15: #{tpu_custom_call.1} parent=11 // pred_region
          %s247 = ssub.s32 2048, 2048
          %248 = vsyncadd [#allocation6], %s247
          %s249 = sshll.u32 [#allocation7], 4
          %s250 = int_to_ptr.vmem [resolvable:$true] %s249
          %255 = dma.hbm_to_vmem [thread:$0]  %s2, 2048, %s250, [#allocation6], 128, 128, 8
        $region16: #{tpu_custom_call.1} parent=11 // pred_fallthru
          _
        // Predicated region
        $region17: #{tpu_custom_call.1} parent=11 // pred_check
          %p256 = pneg %p118
        $region18: #{tpu_custom_call.1} parent=11 // pred_check_branch
          %258 = sbr.rel (%p256) target = $region20
        $region19: #{tpu_custom_call.1} parent=11 // pred_region
          _
        $region20: #{tpu_custom_call.1} parent=11 // pred_fallthru
          _
        // Predicated region
        $region21: #{tpu_custom_call.1} parent=11 // pred_check
          %p259 = pneg %p139
        $region22: #{tpu_custom_call.1} parent=11 // pred_check_branch
          %261 = sbr.rel (%p259) target = $region24
        $region23: #{tpu_custom_call.1} parent=11 // pred_region
          %s263 = ssub.s32 2048, 2048
          %264 = vsyncadd [#allocation9], %s263
          %s265 = sshll.u32 [#allocation8], 4
          %s266 = int_to_ptr.vmem [resolvable:$true] %s265
          %271 = dma.hbm_to_vmem [thread:$0]  %s4, 2048, %s266, [#allocation9], 128, 128, 8
        $region24: #{tpu_custom_call.1} parent=11 // pred_fallthru
          _
        // Predicated region
        $region25: #{tpu_custom_call.1} parent=11 // pred_check
          %p272 = pneg %p160
        $region26: #{tpu_custom_call.1} parent=11 // pred_check_branch
          %274 = sbr.rel (%p272) target = $region28
        $region27: #{tpu_custom_call.1} parent=11 // pred_region
          _
        $region28: #{tpu_custom_call.1} parent=11 // pred_fallthru
          _
        // Predicated region
        $region29: #{tpu_custom_call.1} parent=11 // pred_check
          %p275 = pneg %p181
        $region30: #{tpu_custom_call.1} parent=11 // pred_check_branch
          %277 = sbr.rel (%p275) target = $region32
        $region31: #{tpu_custom_call.1} parent=11 // pred_region
          %s279 = ssub.s32 2048, 2048
          %280 = vsyncadd [#allocation9], %s279
          %s281 = sshll.u32 [#allocation10], 4
          %s282 = int_to_ptr.vmem [resolvable:$true] %s281
          %287 = dma.hbm_to_vmem [thread:$0]  %s6, 2048, %s282, [#allocation9], 128, 128, 8
        $region32: #{tpu_custom_call.1} parent=11 // pred_fallthru
          _
        // Predicated region
        $region33: #{tpu_custom_call.1} parent=11 // pred_check
          %p288 = pneg %p202
        $region34: #{tpu_custom_call.1} parent=11 // pred_check_branch
          %290 = sbr.rel (%p288) target = $region36
        $region35: #{tpu_custom_call.1} parent=11 // pred_region
          _
        $region36: #{tpu_custom_call.1} parent=11 // pred_fallthru
          _
      $region12: #{tpu_custom_call.1} parent=5 // pred_fallthru
        _
      %p291 = scmp.lt.s32.totalorder %s24, 2
      // Predicated region
      $region37: #{tpu_custom_call.1} parent=5 // pred_check
        %p292 = pneg %p291
      $region38: #{tpu_custom_call.1} parent=5 // pred_check_branch
        %294 = sbr.rel (%p292) target = $region40
      $region39: #{tpu_custom_call.1} parent=5 // pred_region
        // Predicated region
        $region41: #{tpu_custom_call.1} parent=39 // pred_check
          %p295 = pneg %p44
        $region42: #{tpu_custom_call.1} parent=39 // pred_check_branch
          %297 = sbr.rel (%p295) target = $region44
        $region43: #{tpu_custom_call.1} parent=39 // pred_region
          %s298 = sand.u32 %s34, 1
          %s299 = scalar_lea.sflag [#allocation3], %s298
          %s300 = sand.u32 %s34, 1
          %s301 = smul.addr %s300, 16
          %s302 = scalar_lea.vmem [#allocation2], %s301
          %s303 = smul.u32 2, %s24
          %s305 = ssub.s32 256, 256
          %306 = vsyncadd %s299, %s305
          %s307 = smul.addr %s303, 128
          %s308 = scalar_lea.hbm %s0, %s307
          %s309 = sshll.u32 %s302, 4
          %s310 = int_to_ptr.vmem [resolvable:$true] %s309
          %315 = dma.hbm_to_vmem [thread:$0]  %s308, 256, %s310, %s299, 128, 128, 8
        $region44: #{tpu_custom_call.1} parent=39 // pred_fallthru
          _
        // Predicated region
        $region45: #{tpu_custom_call.1} parent=39 // pred_check
          %p316 = pneg %p70
        $region46: #{tpu_custom_call.1} parent=39 // pred_check_branch
          %318 = sbr.rel (%p316) target = $region48
        $region47: #{tpu_custom_call.1} parent=39 // pred_region
          %s319 = sand.u32 %s24, 1
          %s320 = scalar_lea.sflag [#allocation6], %s319
          %s321 = sand.u32 %s60, 1
          %s322 = smul.addr %s321, 24
          %s323 = scalar_lea.vmem [#allocation5], %s322
          %s324 = smul.u32 2, %s24
          %s326 = ssub.s32 384, 384
          %327 = vsyncadd %s320, %s326
          %s328 = smul.addr %s324, 3
          %s329 = smul.addr %s328, 64
          %s330 = scalar_lea.hbm %s1, %s329
          %s331 = sshll.u32 %s323, 4
          %s332 = int_to_ptr.vmem [resolvable:$true] %s331
          %337 = dma.hbm_to_vmem [thread:$0]  %s330, 384, %s332, %s320, 192, 192, 12
        $region48: #{tpu_custom_call.1} parent=39 // pred_fallthru
          _
      $region40: #{tpu_custom_call.1} parent=5 // pred_fallthru
        _
      %p338 = scmp.le.s32.totalorder 1, %s24
      %p339 = scmp.lt.s32.totalorder %s24, 3
      %p340 = pnand %p338, %p339
      %p341 = pneg %p340
      // Predicated region
      $region49: #{tpu_custom_call.1} parent=5 // pred_check
        _
      $region50: #{tpu_custom_call.1} parent=5 // pred_check_branch
        %343 = sbr.rel (%p340) target = $region52
      $region51: #{tpu_custom_call.1} parent=5 // pred_region
        %s344 = ssub.s32 %s24, 1
        %s345 = sand.u32 %s37, 1
        %s346 = scalar_lea.sflag [#allocation3], %s345
        %s347 = sand.u32 %s37, 1
        %s348 = smul.addr %s347, 16
        %s349 = scalar_lea.vmem [#allocation2], %s348
        // Predicated region
        $region53: #{tpu_custom_call.1} parent=51 // pred_check
          %p350 = pneg %p50
        $region54: #{tpu_custom_call.1} parent=51 // pred_check_branch
          %352 = sbr.rel (%p350) target = $region56
        $region55: #{tpu_custom_call.1} parent=51 // pred_region
          %353 = dma.done %s346, 256
        $region56: #{tpu_custom_call.1} parent=51 // pred_fallthru
          _
        %s354 = sand.u32 %s29, 1
        %s355 = scalar_lea.sflag [#allocation6], %s354
        %s356 = sand.u32 %s63, 1
        %s357 = smul.addr %s356, 24
        %s358 = scalar_lea.vmem [#allocation5], %s357
        // Predicated region
        $region57: #{tpu_custom_call.1} parent=51 // pred_check
          %p359 = pneg %p76
        $region58: #{tpu_custom_call.1} parent=51 // pred_check_branch
          %361 = sbr.rel (%p359) target = $region60
        $region59: #{tpu_custom_call.1} parent=51 // pred_region
          %362 = dma.done %s355, 384
        $region60: #{tpu_custom_call.1} parent=51 // pred_fallthru
          _
        // Predicated region
        $region61: #{tpu_custom_call.1} parent=51 // pred_check
          %p363 = pneg %p97
        $region62: #{tpu_custom_call.1} parent=51 // pred_check_branch
          %365 = sbr.rel (%p363) target = $region64
        $region63: #{tpu_custom_call.1} parent=51 // pred_region
          %366 = dma.done [#allocation6], 2048
        $region64: #{tpu_custom_call.1} parent=51 // pred_fallthru
          _
        // Predicated region
        $region65: #{tpu_custom_call.1} parent=51 // pred_check
          %p367 = pneg %p139
        $region66: #{tpu_custom_call.1} parent=51 // pred_check_branch
          %369 = sbr.rel (%p367) target = $region68
        $region67: #{tpu_custom_call.1} parent=51 // pred_region
          %370 = dma.done [#allocation9], 2048
        $region68: #{tpu_custom_call.1} parent=51 // pred_fallthru
          _
        // Predicated region
        $region69: #{tpu_custom_call.1} parent=51 // pred_check
          %p371 = pneg %p181
        $region70: #{tpu_custom_call.1} parent=51 // pred_check_branch
          %373 = sbr.rel (%p371) target = $region72
        $region71: #{tpu_custom_call.1} parent=51 // pred_region
          %374 = dma.done [#allocation9], 2048
        $region72: #{tpu_custom_call.1} parent=51 // pred_fallthru
          _
        %s375 = sand.u32 %s37, 1
        %s376 = scalar_lea.sflag [#allocation3], %s375
        %s377 = sand.u32 %s37, 1
        %s378 = smul.addr %s377, 16
        %s379 = scalar_lea.vmem [#allocation2], %s378
        %p380 = pneg %p50
        %p381 = pneg %p47
        %s382 = sand.u32 %s29, 1
        %s383 = scalar_lea.sflag [#allocation6], %s382
        %s384 = sand.u32 %s63, 1
        %s385 = smul.addr %s384, 24
        %s386 = scalar_lea.vmem [#allocation5], %s385
        %p387 = pneg %p76
        %p388 = pneg %p73
        %p389 = pneg %p97
        %p390 = pneg %p94
        %p391 = pneg %p118
        %p392 = pneg %p115
        %p393 = pneg %p139
        %p394 = pneg %p136
        %p395 = pneg %p160
        %p396 = pneg %p157
        %p397 = pneg %p181
        %p398 = pneg %p178
        %p399 = pneg %p202
        %p400 = pneg %p199
        %p401 = pneg %p228
        %p402 = pneg %p225
        %s403 = sand.u32 %s215, 1
        %s404 = scalar_lea.sflag [#allocation4], %s403
        %s405 = sand.u32 %s215, 1
        %s406 = smul.addr %s405, 16
        %s407 = scalar_lea.vmem [#allocation11], %s406
        %s408 = smul.u32 2, %s29
        %s409 = smul.u32 2, %s29
        %s410 = smul.u32 2, %s29
        %v412 = vld [vmem:[%s349] sm:$0xff]
        %v413 = vld [vmem:[%s349 + $0x8] sm:$0xff]
        %v414 = vld [vmem:[%s3] sm:$0x3]
        %v415 = vpack.c.bf16 %v413, %v412
        %v416 = vmul.f32 %v412, %v412
        %v417 = vmul.f32 %v413, %v413
        %v418 = vpack.c.bf16 %v417, %v416
        %v419 = vld [vmem:[#allocation7] sm:$0xf]
        %v420 = vld [vmem:[#allocation7 + $0x8] sm:$0xf]
        %v421 = vld [vmem:[#allocation7 + $0x10] sm:$0xf]
        %v422 = vld [vmem:[#allocation7 + $0x18] sm:$0xf]
        %v423 = vld [vmem:[#allocation7 + $0x20] sm:$0xf]
        %v424 = vld [vmem:[#allocation7 + $0x28] sm:$0xf]
        %v425 = vld [vmem:[#allocation7 + $0x30] sm:$0xf]
        %v426 = vld [vmem:[#allocation7 + $0x38] sm:$0xf]
        %v427 = vld [vmem:[#allocation7 + $0x40] sm:$0xf]
        %v428 = vld [vmem:[#allocation7 + $0x48] sm:$0xf]
        %v429 = vld [vmem:[#allocation7 + $0x50] sm:$0xf]
        %v430 = vld [vmem:[#allocation7 + $0x58] sm:$0xf]
        %v431 = vld [vmem:[#allocation7 + $0x60] sm:$0xf]
        %v432 = vld [vmem:[#allocation7 + $0x68] sm:$0xf]
        %v433 = vld [vmem:[#allocation7 + $0x70] sm:$0xf]
        %v434 = vld [vmem:[#allocation7 + $0x78] sm:$0xf]
        %v435 = vlaneseq
        %v436 = vshrl.u32 %v435, 7
        %v437 = vsub.s32 0, %v436
        %v438 = vrot.slane %v414, %v437
        %v455 = vunpack.c.l.b16 %v419
        %v456 = vunpack.c.l.b16 %v420
        %v457 = vunpack.c.l.b16 %v421
        %v458 = vunpack.c.l.b16 %v422
        %v459 = vunpack.c.l.b16 %v423
        %v460 = vunpack.c.l.b16 %v424
        %v461 = vunpack.c.l.b16 %v425
        %v462 = vunpack.c.l.b16 %v426
        %v463 = vunpack.c.l.b16 %v427
        %v464 = vunpack.c.l.b16 %v428
        %v465 = vunpack.c.l.b16 %v429
        %v466 = vunpack.c.l.b16 %v430
        %v467 = vunpack.c.l.b16 %v431
        %v468 = vunpack.c.l.b16 %v432
        %v469 = vunpack.c.l.b16 %v433
        %v470 = vunpack.c.l.b16 %v434
        %v471 = vpack.c.b16 %v456, %v455
        %v472 = vpack.c.b16 %v458, %v457
        %v473 = vpack.c.b16 %v460, %v459
        %v474 = vpack.c.b16 %v462, %v461
        %v475 = vpack.c.b16 %v464, %v463
        %v476 = vpack.c.b16 %v466, %v465
        %v477 = vpack.c.b16 %v468, %v467
        %v478 = vpack.c.b16 %v470, %v469
        %487 = vmatprep.subr.bf16.mxu0 0
        %488 = vmatpush1.bf16.msra.mxu0 %v478
        %489 = vmatprep.subr.bf16.mxu0 0
        %490 = vmatpush1.bf16.msra.mxu0 %v477
        %491 = vmatprep.subr.bf16.mxu0 0
        %492 = vmatpush1.bf16.msra.mxu0 %v476
        %493 = vmatprep.subr.bf16.mxu0 0
        %494 = vmatpush1.bf16.msra.mxu0 %v475
        %495 = vmatprep.subr.bf16.mxu0 0
        %496 = vmatpush1.bf16.msra.mxu0 %v474
        %497 = vmatprep.subr.bf16.mxu0 0
        %498 = vmatpush1.bf16.msra.mxu0 %v473
        %499 = vmatprep.subr.bf16.mxu0 0
        %500 = vmatpush1.bf16.msra.mxu0 %v472
        %501 = vmatprep.subr.bf16.mxu0 0
        %502 = vmatpush1.bf16.msra.mxu0 %v471
        %503 = vmatprep.subr.bf16.mxu0 0
        %504 = vmatpush2.bf16.msra.mxu0 0
        %505 = vmatprep.subr.bf16.mxu0 0
        %506 = vmatpush2.bf16.msra.mxu0 0
        %507 = vmatprep.subr.bf16.mxu0 0
        %508 = vmatpush2.bf16.msra.mxu0 0
        %509 = vmatprep.subr.bf16.mxu0 0
        %510 = vmatpush2.bf16.msra.mxu0 0
        %511 = vmatprep.subr.bf16.mxu0 0
        %512 = vmatpush2.bf16.msra.mxu0 0
        %513 = vmatprep.subr.bf16.mxu0 0
        %514 = vmatpush2.bf16.msra.mxu0 0
        %515 = vmatprep.subr.bf16.mxu0 0
        %516 = vmatpush2.bf16.msra.mxu0 0
        %517 = vmatprep.subr.bf16.mxu0 0
        %518 = vmatpush2.bf16.msra.mxu0 0
        %519 = vmatprep.mubr.bf16.mxu0 0
        %520 = vmatmul.mubr.bf16.gmra.mxu0 %v415
        %v521 = vpop.f32.mrf.mxu0
        %v522 = vadd.f32 %v438, %v521
        %v523 = vpop.f32.mrf.mxu0
        %v524 = vpop.f32.mrf.mxu0
        %v525 = vadd.f32 %v438, %v524
        %v526 = vpop.f32.mrf.mxu0
        %527 = vdwg.mxu0
        %v528 = vld [vmem:[#allocation7 + $0x4] sm:$0xf]
        %v529 = vld [vmem:[#allocation7 + $0xc] sm:$0xf]
        %v530 = vld [vmem:[#allocation7 + $0x14] sm:$0xf]
        %v531 = vld [vmem:[#allocation7 + $0x1c] sm:$0xf]
        %v532 = vld [vmem:[#allocation7 + $0x24] sm:$0xf]
        %v533 = vld [vmem:[#allocation7 + $0x2c] sm:$0xf]
        %v534 = vld [vmem:[#allocation7 + $0x34] sm:$0xf]
        %v535 = vld [vmem:[#allocation7 + $0x3c] sm:$0xf]
        %v536 = vld [vmem:[#allocation7 + $0x44] sm:$0xf]
        %v537 = vld [vmem:[#allocation7 + $0x4c] sm:$0xf]
        %v538 = vld [vmem:[#allocation7 + $0x54] sm:$0xf]
        %v539 = vld [vmem:[#allocation7 + $0x5c] sm:$0xf]
        %v540 = vld [vmem:[#allocation7 + $0x64] sm:$0xf]
        %v541 = vld [vmem:[#allocation7 + $0x6c] sm:$0xf]
        %v542 = vld [vmem:[#allocation7 + $0x74] sm:$0xf]
        %v543 = vld [vmem:[#allocation7 + $0x7c] sm:$0xf]
        %v544 = vlaneseq
        %v545 = vshrl.u32 %v544, 7
        %v546 = vsub.s32 1, %v545
        %v547 = vrot.slane %v414, %v546
        %v564 = vunpack.c.l.b16 %v528
        %v565 = vunpack.c.l.b16 %v529
        %v566 = vunpack.c.l.b16 %v530
        %v567 = vunpack.c.l.b16 %v531
        %v568 = vunpack.c.l.b16 %v532
        %v569 = vunpack.c.l.b16 %v533
        %v570 = vunpack.c.l.b16 %v534
        %v571 = vunpack.c.l.b16 %v535
        %v572 = vunpack.c.l.b16 %v536
        %v573 = vunpack.c.l.b16 %v537
        %v574 = vunpack.c.l.b16 %v538
        %v575 = vunpack.c.l.b16 %v539
        %v576 = vunpack.c.l.b16 %v540
        %v577 = vunpack.c.l.b16 %v541
        %v578 = vunpack.c.l.b16 %v542
        %v579 = vunpack.c.l.b16 %v543
        %v580 = vpack.c.b16 %v565, %v564
        %v581 = vpack.c.b16 %v567, %v566
        %v582 = vpack.c.b16 %v569, %v568
        %v583 = vpack.c.b16 %v571, %v570
        %v584 = vpack.c.b16 %v573, %v572
        %v585 = vpack.c.b16 %v575, %v574
        %v586 = vpack.c.b16 %v577, %v576
        %v587 = vpack.c.b16 %v579, %v578
        %596 = vmatprep.subr.bf16.mxu0 0
        %597 = vmatpush1.bf16.msra.mxu0 %v587
        %598 = vmatprep.subr.bf16.mxu0 0
        %599 = vmatpush1.bf16.msra.mxu0 %v586
        %600 = vmatprep.subr.bf16.mxu0 0
        %601 = vmatpush1.bf16.msra.mxu0 %v585
        %602 = vmatprep.subr.bf16.mxu0 0
        %603 = vmatpush1.bf16.msra.mxu0 %v584
        %604 = vmatprep.subr.bf16.mxu0 0
        %605 = vmatpush1.bf16.msra.mxu0 %v583
        %606 = vmatprep.subr.bf16.mxu0 0
        %607 = vmatpush1.bf16.msra.mxu0 %v582
        %608 = vmatprep.subr.bf16.mxu0 0
        %609 = vmatpush1.bf16.msra.mxu0 %v581
        %610 = vmatprep.subr.bf16.mxu0 0
        %611 = vmatpush1.bf16.msra.mxu0 %v580
        %612 = vmatprep.subr.bf16.mxu0 0
        %613 = vmatpush2.bf16.msra.mxu0 0
        %614 = vmatprep.subr.bf16.mxu0 0
        %615 = vmatpush2.bf16.msra.mxu0 0
        %616 = vmatprep.subr.bf16.mxu0 0
        %617 = vmatpush2.bf16.msra.mxu0 0
        %618 = vmatprep.subr.bf16.mxu0 0
        %619 = vmatpush2.bf16.msra.mxu0 0
        %620 = vmatprep.subr.bf16.mxu0 0
        %621 = vmatpush2.bf16.msra.mxu0 0
        %622 = vmatprep.subr.bf16.mxu0 0
        %623 = vmatpush2.bf16.msra.mxu0 0
        %624 = vmatprep.subr.bf16.mxu0 0
        %625 = vmatpush2.bf16.msra.mxu0 0
        %626 = vmatprep.subr.bf16.mxu0 0
        %627 = vmatpush2.bf16.msra.mxu0 0
        %628 = vmatprep.mubr.bf16.mxu0 0
        %629 = vmatmul.mubr.bf16.gmra.mxu0 %v418
        %v630 = vpop.f32.mrf.mxu0
        %v631 = vadd.f32 %v547, %v630
        %v632 = vpop.f32.mrf.mxu0
        %v633 = vpop.f32.mrf.mxu0
        %v634 = vadd.f32 %v547, %v633
        %v635 = vpop.f32.mrf.mxu0
        %636 = vdwg.mxu0
        %v637 = vld [vmem:[%s358] sm:$0xf]
        %v638 = vld [vmem:[%s358 + $0xc] sm:$0xf]
        %v639 = vunpack.c.l.bf16 %v637
        %v640 = vunpack.c.l.bf16 %v638
        %v641 = vrsqrt.pop %v631
        %v642 = vmul.f32 %v631, %v641
        %vm643 = vcmp.eq.f32.partialorder %v631, inf
        %v644 = vsel %vm643, %v631, %v642
        %vm645 = vcmp.eq.f32.partialorder %v631, 0.0
        %v646 = vand.u32 %v631, 2147483648
        %v647 = vsel %vm645, %v646, %v644
        %v648 = vrsqrt.pop %v634
        %v649 = vmul.f32 %v634, %v648
        %vm650 = vcmp.eq.f32.partialorder %v634, inf
        %v651 = vsel %vm650, %v634, %v649
        %vm652 = vcmp.eq.f32.partialorder %v634, 0.0
        %v653 = vand.u32 %v634, 2147483648
        %v654 = vsel %vm652, %v653, %v651
        %v655 = vmul.f32 %v647, %v639
        %v656 = vmul.f32 %v654, %v640
        %v657 = vadd.f32 %v522, %v655
        %v658 = vadd.f32 %v525, %v656
        %v659 = vmax.f32 %v657, 0.0
        %v660 = vmax.f32 %v658, 0.0
        %v661 = vld [vmem:[%s5] sm:$0x3]
        %v662 = vpack.c.bf16 %v660, %v659
        %v663 = vmul.f32 %v659, %v659
        %v664 = vmul.f32 %v660, %v660
        %v665 = vpack.c.bf16 %v664, %v663
        %v666 = vld [vmem:[#allocation8] sm:$0xf]
        %v667 = vld [vmem:[#allocation8 + $0x8] sm:$0xf]
        %v668 = vld [vmem:[#allocation8 + $0x10] sm:$0xf]
        %v669 = vld [vmem:[#allocation8 + $0x18] sm:$0xf]
        %v670 = vld [vmem:[#allocation8 + $0x20] sm:$0xf]
        %v671 = vld [vmem:[#allocation8 + $0x28] sm:$0xf]
        %v672 = vld [vmem:[#allocation8 + $0x30] sm:$0xf]
        %v673 = vld [vmem:[#allocation8 + $0x38] sm:$0xf]
        %v674 = vld [vmem:[#allocation8 + $0x40] sm:$0xf]
        %v675 = vld [vmem:[#allocation8 + $0x48] sm:$0xf]
        %v676 = vld [vmem:[#allocation8 + $0x50] sm:$0xf]
        %v677 = vld [vmem:[#allocation8 + $0x58] sm:$0xf]
        %v678 = vld [vmem:[#allocation8 + $0x60] sm:$0xf]
        %v679 = vld [vmem:[#allocation8 + $0x68] sm:$0xf]
        %v680 = vld [vmem:[#allocation8 + $0x70] sm:$0xf]
        %v681 = vld [vmem:[#allocation8 + $0x78] sm:$0xf]
        %v682 = vlaneseq
        %v683 = vshrl.u32 %v682, 7
        %v684 = vsub.s32 0, %v683
        %v685 = vrot.slane %v661, %v684
        %v702 = vunpack.c.l.b16 %v666
        %v703 = vunpack.c.l.b16 %v667
        %v704 = vunpack.c.l.b16 %v668
        %v705 = vunpack.c.l.b16 %v669
        %v706 = vunpack.c.l.b16 %v670
        %v707 = vunpack.c.l.b16 %v671
        %v708 = vunpack.c.l.b16 %v672
        %v709 = vunpack.c.l.b16 %v673
        %v710 = vunpack.c.l.b16 %v674
        %v711 = vunpack.c.l.b16 %v675
        %v712 = vunpack.c.l.b16 %v676
        %v713 = vunpack.c.l.b16 %v677
        %v714 = vunpack.c.l.b16 %v678
        %v715 = vunpack.c.l.b16 %v679
        %v716 = vunpack.c.l.b16 %v680
        %v717 = vunpack.c.l.b16 %v681
        %v718 = vpack.c.b16 %v703, %v702
        %v719 = vpack.c.b16 %v705, %v704
        %v720 = vpack.c.b16 %v707, %v706
        %v721 = vpack.c.b16 %v709, %v708
        %v722 = vpack.c.b16 %v711, %v710
        %v723 = vpack.c.b16 %v713, %v712
        %v724 = vpack.c.b16 %v715, %v714
        %v725 = vpack.c.b16 %v717, %v716
        %734 = vmatprep.subr.bf16.mxu0 0
        %735 = vmatpush1.bf16.msra.mxu0 %v725
        %736 = vmatprep.subr.bf16.mxu0 0
        %737 = vmatpush1.bf16.msra.mxu0 %v724
        %738 = vmatprep.subr.bf16.mxu0 0
        %739 = vmatpush1.bf16.msra.mxu0 %v723
        %740 = vmatprep.subr.bf16.mxu0 0
        %741 = vmatpush1.bf16.msra.mxu0 %v722
        %742 = vmatprep.subr.bf16.mxu0 0
        %743 = vmatpush1.bf16.msra.mxu0 %v721
        %744 = vmatprep.subr.bf16.mxu0 0
        %745 = vmatpush1.bf16.msra.mxu0 %v720
        %746 = vmatprep.subr.bf16.mxu0 0
        %747 = vmatpush1.bf16.msra.mxu0 %v719
        %748 = vmatprep.subr.bf16.mxu0 0
        %749 = vmatpush1.bf16.msra.mxu0 %v718
        %750 = vmatprep.subr.bf16.mxu0 0
        %751 = vmatpush2.bf16.msra.mxu0 0
        %752 = vmatprep.subr.bf16.mxu0 0
        %753 = vmatpush2.bf16.msra.mxu0 0
        %754 = vmatprep.subr.bf16.mxu0 0
        %755 = vmatpush2.bf16.msra.mxu0 0
        %756 = vmatprep.subr.bf16.mxu0 0
        %757 = vmatpush2.bf16.msra.mxu0 0
        %758 = vmatprep.subr.bf16.mxu0 0
        %759 = vmatpush2.bf16.msra.mxu0 0
        %760 = vmatprep.subr.bf16.mxu0 0
        %761 = vmatpush2.bf16.msra.mxu0 0
        %762 = vmatprep.subr.bf16.mxu0 0
        %763 = vmatpush2.bf16.msra.mxu0 0
        %764 = vmatprep.subr.bf16.mxu0 0
        %765 = vmatpush2.bf16.msra.mxu0 0
        %766 = vmatprep.mubr.bf16.mxu0 0
        %767 = vmatmul.mubr.bf16.gmra.mxu0 %v662
        %v768 = vpop.f32.mrf.mxu0
        %v769 = vadd.f32 %v685, %v768
        %v770 = vpop.f32.mrf.mxu0
        %v771 = vpop.f32.mrf.mxu0
        %v772 = vadd.f32 %v685, %v771
        %v773 = vpop.f32.mrf.mxu0
        %774 = vdwg.mxu0
        %v775 = vld [vmem:[#allocation8 + $0x4] sm:$0xf]
        %v776 = vld [vmem:[#allocation8 + $0xc] sm:$0xf]
        %v777 = vld [vmem:[#allocation8 + $0x14] sm:$0xf]
        %v778 = vld [vmem:[#allocation8 + $0x1c] sm:$0xf]
        %v779 = vld [vmem:[#allocation8 + $0x24] sm:$0xf]
        %v780 = vld [vmem:[#allocation8 + $0x2c] sm:$0xf]
        %v781 = vld [vmem:[#allocation8 + $0x34] sm:$0xf]
        %v782 = vld [vmem:[#allocation8 + $0x3c] sm:$0xf]
        %v783 = vld [vmem:[#allocation8 + $0x44] sm:$0xf]
        %v784 = vld [vmem:[#allocation8 + $0x4c] sm:$0xf]
        %v785 = vld [vmem:[#allocation8 + $0x54] sm:$0xf]
        %v786 = vld [vmem:[#allocation8 + $0x5c] sm:$0xf]
        %v787 = vld [vmem:[#allocation8 + $0x64] sm:$0xf]
        %v788 = vld [vmem:[#allocation8 + $0x6c] sm:$0xf]
        %v789 = vld [vmem:[#allocation8 + $0x74] sm:$0xf]
        %v790 = vld [vmem:[#allocation8 + $0x7c] sm:$0xf]
        %v791 = vlaneseq
        %v792 = vshrl.u32 %v791, 7
        %v793 = vsub.s32 1, %v792
        %v794 = vrot.slane %v661, %v793
        %v811 = vunpack.c.l.b16 %v775
        %v812 = vunpack.c.l.b16 %v776
        %v813 = vunpack.c.l.b16 %v777
        %v814 = vunpack.c.l.b16 %v778
        %v815 = vunpack.c.l.b16 %v779
        %v816 = vunpack.c.l.b16 %v780
        %v817 = vunpack.c.l.b16 %v781
        %v818 = vunpack.c.l.b16 %v782
        %v819 = vunpack.c.l.b16 %v783
        %v820 = vunpack.c.l.b16 %v784
        %v821 = vunpack.c.l.b16 %v785
        %v822 = vunpack.c.l.b16 %v786
        %v823 = vunpack.c.l.b16 %v787
        %v824 = vunpack.c.l.b16 %v788
        %v825 = vunpack.c.l.b16 %v789
        %v826 = vunpack.c.l.b16 %v790
        %v827 = vpack.c.b16 %v812, %v811
        %v828 = vpack.c.b16 %v814, %v813
        %v829 = vpack.c.b16 %v816, %v815
        %v830 = vpack.c.b16 %v818, %v817
        %v831 = vpack.c.b16 %v820, %v819
        %v832 = vpack.c.b16 %v822, %v821
        %v833 = vpack.c.b16 %v824, %v823
        %v834 = vpack.c.b16 %v826, %v825
        %843 = vmatprep.subr.bf16.mxu0 0
        %844 = vmatpush1.bf16.msra.mxu0 %v834
        %845 = vmatprep.subr.bf16.mxu0 0
        %846 = vmatpush1.bf16.msra.mxu0 %v833
        %847 = vmatprep.subr.bf16.mxu0 0
        %848 = vmatpush1.bf16.msra.mxu0 %v832
        %849 = vmatprep.subr.bf16.mxu0 0
        %850 = vmatpush1.bf16.msra.mxu0 %v831
        %851 = vmatprep.subr.bf16.mxu0 0
        %852 = vmatpush1.bf16.msra.mxu0 %v830
        %853 = vmatprep.subr.bf16.mxu0 0
        %854 = vmatpush1.bf16.msra.mxu0 %v829
        %855 = vmatprep.subr.bf16.mxu0 0
        %856 = vmatpush1.bf16.msra.mxu0 %v828
        %857 = vmatprep.subr.bf16.mxu0 0
        %858 = vmatpush1.bf16.msra.mxu0 %v827
        %859 = vmatprep.subr.bf16.mxu0 0
        %860 = vmatpush2.bf16.msra.mxu0 0
        %861 = vmatprep.subr.bf16.mxu0 0
        %862 = vmatpush2.bf16.msra.mxu0 0
        %863 = vmatprep.subr.bf16.mxu0 0
        %864 = vmatpush2.bf16.msra.mxu0 0
        %865 = vmatprep.subr.bf16.mxu0 0
        %866 = vmatpush2.bf16.msra.mxu0 0
        %867 = vmatprep.subr.bf16.mxu0 0
        %868 = vmatpush2.bf16.msra.mxu0 0
        %869 = vmatprep.subr.bf16.mxu0 0
        %870 = vmatpush2.bf16.msra.mxu0 0
        %871 = vmatprep.subr.bf16.mxu0 0
        %872 = vmatpush2.bf16.msra.mxu0 0
        %873 = vmatprep.subr.bf16.mxu0 0
        %874 = vmatpush2.bf16.msra.mxu0 0
        %875 = vmatprep.mubr.bf16.mxu0 0
        %876 = vmatmul.mubr.bf16.gmra.mxu0 %v665
        %v877 = vpop.f32.mrf.mxu0
        %v878 = vadd.f32 %v794, %v877
        %v879 = vpop.f32.mrf.mxu0
        %v880 = vpop.f32.mrf.mxu0
        %v881 = vadd.f32 %v794, %v880
        %v882 = vpop.f32.mrf.mxu0
        %883 = vdwg.mxu0
        %v884 = vld [vmem:[%s358 + $0x4] sm:$0xf]
        %v885 = vld [vmem:[%s358 + $0x10] sm:$0xf]
        %v886 = vunpack.c.l.bf16 %v884
        %v887 = vunpack.c.l.bf16 %v885
        %v888 = vrsqrt.pop %v878
        %v889 = vmul.f32 %v878, %v888
        %vm890 = vcmp.eq.f32.partialorder %v878, inf
        %v891 = vsel %vm890, %v878, %v889
        %vm892 = vcmp.eq.f32.partialorder %v878, 0.0
        %v893 = vand.u32 %v878, 2147483648
        %v894 = vsel %vm892, %v893, %v891
        %v895 = vrsqrt.pop %v881
        %v896 = vmul.f32 %v881, %v895
        %vm897 = vcmp.eq.f32.partialorder %v881, inf
        %v898 = vsel %vm897, %v881, %v896
        %vm899 = vcmp.eq.f32.partialorder %v881, 0.0
        %v900 = vand.u32 %v881, 2147483648
        %v901 = vsel %vm899, %v900, %v898
        %v902 = vmul.f32 %v894, %v886
        %v903 = vmul.f32 %v901, %v887
        %v904 = vadd.f32 %v769, %v902
        %v905 = vadd.f32 %v772, %v903
        %v906 = vmax.f32 %v904, 0.0
        %v907 = vmax.f32 %v905, 0.0
        %v908 = vld [vmem:[%s7] sm:$0x3]
        %v909 = vpack.c.bf16 %v907, %v906
        %v910 = vmul.f32 %v906, %v906
        %v911 = vmul.f32 %v907, %v907
        %v912 = vpack.c.bf16 %v911, %v910
        %v913 = vld [vmem:[#allocation10] sm:$0xf]
        %v914 = vld [vmem:[#allocation10 + $0x8] sm:$0xf]
        %v915 = vld [vmem:[#allocation10 + $0x10] sm:$0xf]
        %v916 = vld [vmem:[#allocation10 + $0x18] sm:$0xf]
        %v917 = vld [vmem:[#allocation10 + $0x20] sm:$0xf]
        %v918 = vld [vmem:[#allocation10 + $0x28] sm:$0xf]
        %v919 = vld [vmem:[#allocation10 + $0x30] sm:$0xf]
        %v920 = vld [vmem:[#allocation10 + $0x38] sm:$0xf]
        %v921 = vld [vmem:[#allocation10 + $0x40] sm:$0xf]
        %v922 = vld [vmem:[#allocation10 + $0x48] sm:$0xf]
        %v923 = vld [vmem:[#allocation10 + $0x50] sm:$0xf]
        %v924 = vld [vmem:[#allocation10 + $0x58] sm:$0xf]
        %v925 = vld [vmem:[#allocation10 + $0x60] sm:$0xf]
        %v926 = vld [vmem:[#allocation10 + $0x68] sm:$0xf]
        %v927 = vld [vmem:[#allocation10 + $0x70] sm:$0xf]
        %v928 = vld [vmem:[#allocation10 + $0x78] sm:$0xf]
        %v929 = vlaneseq
        %v930 = vshrl.u32 %v929, 7
        %v931 = vsub.s32 0, %v930
        %v932 = vrot.slane %v908, %v931
        %v949 = vunpack.c.l.b16 %v913
        %v950 = vunpack.c.l.b16 %v914
        %v951 = vunpack.c.l.b16 %v915
        %v952 = vunpack.c.l.b16 %v916
        %v953 = vunpack.c.l.b16 %v917
        %v954 = vunpack.c.l.b16 %v918
        %v955 = vunpack.c.l.b16 %v919
        %v956 = vunpack.c.l.b16 %v920
        %v957 = vunpack.c.l.b16 %v921
        %v958 = vunpack.c.l.b16 %v922
        %v959 = vunpack.c.l.b16 %v923
        %v960 = vunpack.c.l.b16 %v924
        %v961 = vunpack.c.l.b16 %v925
        %v962 = vunpack.c.l.b16 %v926
        %v963 = vunpack.c.l.b16 %v927
        %v964 = vunpack.c.l.b16 %v928
        %v965 = vpack.c.b16 %v950, %v949
        %v966 = vpack.c.b16 %v952, %v951
        %v967 = vpack.c.b16 %v954, %v953
        %v968 = vpack.c.b16 %v956, %v955
        %v969 = vpack.c.b16 %v958, %v957
        %v970 = vpack.c.b16 %v960, %v959
        %v971 = vpack.c.b16 %v962, %v961
        %v972 = vpack.c.b16 %v964, %v963
        %981 = vmatprep.subr.bf16.mxu0 0
        %982 = vmatpush1.bf16.msra.mxu0 %v972
        %983 = vmatprep.subr.bf16.mxu0 0
        %984 = vmatpush1.bf16.msra.mxu0 %v971
        %985 = vmatprep.subr.bf16.mxu0 0
        %986 = vmatpush1.bf16.msra.mxu0 %v970
        %987 = vmatprep.subr.bf16.mxu0 0
        %988 = vmatpush1.bf16.msra.mxu0 %v969
        %989 = vmatprep.subr.bf16.mxu0 0
        %990 = vmatpush1.bf16.msra.mxu0 %v968
        %991 = vmatprep.subr.bf16.mxu0 0
        %992 = vmatpush1.bf16.msra.mxu0 %v967
        %993 = vmatprep.subr.bf16.mxu0 0
        %994 = vmatpush1.bf16.msra.mxu0 %v966
        %995 = vmatprep.subr.bf16.mxu0 0
        %996 = vmatpush1.bf16.msra.mxu0 %v965
        %997 = vmatprep.subr.bf16.mxu0 0
        %998 = vmatpush2.bf16.msra.mxu0 0
        %999 = vmatprep.subr.bf16.mxu0 0
        %1000 = vmatpush2.bf16.msra.mxu0 0
        %1001 = vmatprep.subr.bf16.mxu0 0
        %1002 = vmatpush2.bf16.msra.mxu0 0
        %1003 = vmatprep.subr.bf16.mxu0 0
        %1004 = vmatpush2.bf16.msra.mxu0 0
        %1005 = vmatprep.subr.bf16.mxu0 0
        %1006 = vmatpush2.bf16.msra.mxu0 0
        %1007 = vmatprep.subr.bf16.mxu0 0
        %1008 = vmatpush2.bf16.msra.mxu0 0
        %1009 = vmatprep.subr.bf16.mxu0 0
        %1010 = vmatpush2.bf16.msra.mxu0 0
        %1011 = vmatprep.subr.bf16.mxu0 0
        %1012 = vmatpush2.bf16.msra.mxu0 0
        %1013 = vmatprep.mubr.bf16.mxu0 0
        %1014 = vmatmul.mubr.bf16.gmra.mxu0 %v909
        %v1015 = vpop.f32.mrf.mxu0
        %v1016 = vadd.f32 %v932, %v1015
        %v1017 = vpop.f32.mrf.mxu0
        %v1018 = vpop.f32.mrf.mxu0
        %v1019 = vadd.f32 %v932, %v1018
        %v1020 = vpop.f32.mrf.mxu0
        %1021 = vdwg.mxu0
        %v1022 = vld [vmem:[#allocation10 + $0x4] sm:$0xf]
        %v1023 = vld [vmem:[#allocation10 + $0xc] sm:$0xf]
        %v1024 = vld [vmem:[#allocation10 + $0x14] sm:$0xf]
        %v1025 = vld [vmem:[#allocation10 + $0x1c] sm:$0xf]
        %v1026 = vld [vmem:[#allocation10 + $0x24] sm:$0xf]
        %v1027 = vld [vmem:[#allocation10 + $0x2c] sm:$0xf]
        %v1028 = vld [vmem:[#allocation10 + $0x34] sm:$0xf]
        %v1029 = vld [vmem:[#allocation10 + $0x3c] sm:$0xf]
        %v1030 = vld [vmem:[#allocation10 + $0x44] sm:$0xf]
        %v1031 = vld [vmem:[#allocation10 + $0x4c] sm:$0xf]
        %v1032 = vld [vmem:[#allocation10 + $0x54] sm:$0xf]
        %v1033 = vld [vmem:[#allocation10 + $0x5c] sm:$0xf]
        %v1034 = vld [vmem:[#allocation10 + $0x64] sm:$0xf]
        %v1035 = vld [vmem:[#allocation10 + $0x6c] sm:$0xf]
        %v1036 = vld [vmem:[#allocation10 + $0x74] sm:$0xf]
        %v1037 = vld [vmem:[#allocation10 + $0x7c] sm:$0xf]
        %v1038 = vlaneseq
        %v1039 = vshrl.u32 %v1038, 7
        %v1040 = vsub.s32 1, %v1039
        %v1041 = vrot.slane %v908, %v1040
        %v1058 = vunpack.c.l.b16 %v1022
        %v1059 = vunpack.c.l.b16 %v1023
        %v1060 = vunpack.c.l.b16 %v1024
        %v1061 = vunpack.c.l.b16 %v1025
        %v1062 = vunpack.c.l.b16 %v1026
        %v1063 = vunpack.c.l.b16 %v1027
        %v1064 = vunpack.c.l.b16 %v1028
        %v1065 = vunpack.c.l.b16 %v1029
        %v1066 = vunpack.c.l.b16 %v1030
        %v1067 = vunpack.c.l.b16 %v1031
        %v1068 = vunpack.c.l.b16 %v1032
        %v1069 = vunpack.c.l.b16 %v1033
        %v1070 = vunpack.c.l.b16 %v1034
        %v1071 = vunpack.c.l.b16 %v1035
        %v1072 = vunpack.c.l.b16 %v1036
        %v1073 = vunpack.c.l.b16 %v1037
        %v1074 = vpack.c.b16 %v1059, %v1058
        %v1075 = vpack.c.b16 %v1061, %v1060
        %v1076 = vpack.c.b16 %v1063, %v1062
        %v1077 = vpack.c.b16 %v1065, %v1064
        %v1078 = vpack.c.b16 %v1067, %v1066
        %v1079 = vpack.c.b16 %v1069, %v1068
        %v1080 = vpack.c.b16 %v1071, %v1070
        %v1081 = vpack.c.b16 %v1073, %v1072
        %1090 = vmatprep.subr.bf16.mxu0 0
        %1091 = vmatpush1.bf16.msra.mxu0 %v1081
        %1092 = vmatprep.subr.bf16.mxu0 0
        %1093 = vmatpush1.bf16.msra.mxu0 %v1080
        %1094 = vmatprep.subr.bf16.mxu0 0
        %1095 = vmatpush1.bf16.msra.mxu0 %v1079
        %1096 = vmatprep.subr.bf16.mxu0 0
        %1097 = vmatpush1.bf16.msra.mxu0 %v1078
        %1098 = vmatprep.subr.bf16.mxu0 0
        %1099 = vmatpush1.bf16.msra.mxu0 %v1077
        %1100 = vmatprep.subr.bf16.mxu0 0
        %1101 = vmatpush1.bf16.msra.mxu0 %v1076
        %1102 = vmatprep.subr.bf16.mxu0 0
        %1103 = vmatpush1.bf16.msra.mxu0 %v1075
        %1104 = vmatprep.subr.bf16.mxu0 0
        %1105 = vmatpush1.bf16.msra.mxu0 %v1074
        %1106 = vmatprep.subr.bf16.mxu0 0
        %1107 = vmatpush2.bf16.msra.mxu0 0
        %1108 = vmatprep.subr.bf16.mxu0 0
        %1109 = vmatpush2.bf16.msra.mxu0 0
        %1110 = vmatprep.subr.bf16.mxu0 0
        %1111 = vmatpush2.bf16.msra.mxu0 0
        %1112 = vmatprep.subr.bf16.mxu0 0
        %1113 = vmatpush2.bf16.msra.mxu0 0
        %1114 = vmatprep.subr.bf16.mxu0 0
        %1115 = vmatpush2.bf16.msra.mxu0 0
        %1116 = vmatprep.subr.bf16.mxu0 0
        %1117 = vmatpush2.bf16.msra.mxu0 0
        %1118 = vmatprep.subr.bf16.mxu0 0
        %1119 = vmatpush2.bf16.msra.mxu0 0
        %1120 = vmatprep.subr.bf16.mxu0 0
        %1121 = vmatpush2.bf16.msra.mxu0 0
        %1122 = vmatprep.mubr.bf16.mxu0 0
        %1123 = vmatmul.mubr.bf16.gmra.mxu0 %v912
        %v1124 = vpop.f32.mrf.mxu0
        %v1125 = vadd.f32 %v1041, %v1124
        %v1126 = vpop.f32.mrf.mxu0
        %v1127 = vpop.f32.mrf.mxu0
        %v1128 = vadd.f32 %v1041, %v1127
        %v1129 = vpop.f32.mrf.mxu0
        %1130 = vdwg.mxu0
        %v1131 = vld [vmem:[%s358 + $0x8] sm:$0xf]
        %v1132 = vld [vmem:[%s358 + $0x14] sm:$0xf]
        %v1133 = vunpack.c.l.bf16 %v1131
        %v1134 = vunpack.c.l.bf16 %v1132
        %v1135 = vrsqrt.pop %v1125
        %v1136 = vmul.f32 %v1125, %v1135
        %vm1137 = vcmp.eq.f32.partialorder %v1125, inf
        %v1138 = vsel %vm1137, %v1125, %v1136
        %vm1139 = vcmp.eq.f32.partialorder %v1125, 0.0
        %v1140 = vand.u32 %v1125, 2147483648
        %v1141 = vsel %vm1139, %v1140, %v1138
        %v1142 = vrsqrt.pop %v1128
        %v1143 = vmul.f32 %v1128, %v1142
        %vm1144 = vcmp.eq.f32.partialorder %v1128, inf
        %v1145 = vsel %vm1144, %v1128, %v1143
        %vm1146 = vcmp.eq.f32.partialorder %v1128, 0.0
        %v1147 = vand.u32 %v1128, 2147483648
        %v1148 = vsel %vm1146, %v1147, %v1145
        %v1149 = vmul.f32 %v1141, %v1133
        %v1150 = vmul.f32 %v1148, %v1134
        %v1151 = vadd.f32 %v1016, %v1149
        %v1152 = vadd.f32 %v1019, %v1150
        %v1153 = vmul.f32 %v1151, 0.17677669
        %v1154 = vmul.f32 %v1152, 0.17677669
        %1155 = vst [vmem:[%s407] sm:$0xff] %v1153
        %1156 = vst [vmem:[%s407 + $0x8] sm:$0xff] %v1154
        %s1157 = sand.u32 %s215, 1
        %s1158 = scalar_lea.sflag [#allocation4], %s1157
        %s1159 = sand.u32 %s215, 1
        %s1160 = smul.addr %s1159, 16
        %s1161 = scalar_lea.vmem [#allocation11], %s1160
        // Predicated region
        $region73: #{tpu_custom_call.1} parent=51 // pred_check
          %p1162 = pneg %p225
        $region74: #{tpu_custom_call.1} parent=51 // pred_check_branch
          %1164 = sbr.rel (%p1162) target = $region76
        $region75: #{tpu_custom_call.1} parent=51 // pred_region
          %s1165 = smul.u32 2, %s29
          %s1167 = ssub.s32 256, 256
          %1168 = vsyncadd %s1158, %s1167
          %s1169 = smul.addr %s1165, 128
          %s1170 = scalar_lea.hbm %s8, %s1169
          %s1171 = sshll.u32 %s1161, 4
          %s1172 = int_to_ptr.vmem [resolvable:$true] %s1171
          %1177 = dma.vmem_to_hbm [thread:$0]  %s1172, 256, %s1170, %s1158, 128, 128, 8
        $region76: #{tpu_custom_call.1} parent=51 // pred_fallthru
          _
      $region52: #{tpu_custom_call.1} parent=5 // pred_fallthru
        _
      %p1178 = scmp.le.s32.totalorder 2, %s24
      // Predicated region
      $region77: #{tpu_custom_call.1} parent=5 // pred_check
        %p1179 = pneg %p1178
      $region78: #{tpu_custom_call.1} parent=5 // pred_check_branch
        %1181 = sbr.rel (%p1179) target = $region80
      $region79: #{tpu_custom_call.1} parent=5 // pred_region
        %s1182 = ssub.s32 %s24, 2
        // Predicated region
        $region81: #{tpu_custom_call.1} parent=79 // pred_check
          %p1183 = pneg %p231
        $region82: #{tpu_custom_call.1} parent=79 // pred_check_branch
          %1185 = sbr.rel (%p1183) target = $region84
        $region83: #{tpu_custom_call.1} parent=79 // pred_region
          %s1186 = sand.u32 %s216, 1
          %s1187 = scalar_lea.sflag [#allocation4], %s1186
          %s1188 = sand.u32 %s216, 1
          %s1189 = smul.addr %s1188, 16
          %s1190 = scalar_lea.vmem [#allocation11], %s1189
          %1191 = dma.done %s1187, 256
        $region84: #{tpu_custom_call.1} parent=79 // pred_fallthru
          _
      $region80: #{tpu_custom_call.1} parent=5 // pred_fallthru
        _
    $region6: #{tpu_custom_call.1} parent=1 // loop_footer
      %s28 = sadd.s32 1, %s24
    $region7: #{tpu_custom_call.1} parent=1 // loop_footer_branch
      %23 = sbr.rel target = $region3
    $region8: #{tpu_custom_call.1} parent=1 // loop_exit
      _
    %1192 = vsyncpa [#allocation3], 1
    %s1193 = scalar_lea.sflag [#allocation3], 1
    %1194 = vsyncpa %s1193, 1
    %1195 = vsyncpa [#allocation6], 1
    %s1196 = scalar_lea.sflag [#allocation6], 1
    %1197 = vsyncpa %s1196, 1
    %1198 = vsyncpa [#allocation9], 1
    %1199 = vsyncpa [#allocation4], 1
    %s1200 = scalar_lea.sflag [#allocation4], 1
    %1201 = vsyncpa %s1200, 1

</llo_original>
